<compile_context>
chip_gen: v7x
topology: tpu7x:2x2x1
jax: 0.10.0
libtpu: 0.0.40
codegen_flags: <defaults>
</compile_context>

<pallas_src>
import functools
import math
from typing import NamedTuple

import jax
import jax.numpy as jnp
from jax.experimental import pallas as pl
from jax.experimental.pallas import tpu as pltpu


_INV_SQRT2 = 0.7071067811865476


# --------------------------------------------------------------------------- #
# Kernel
# --------------------------------------------------------------------------- #
def _geglu_kernel(x_ref, w_ref, b_ref, o_ref, acc_ref, *, tn):
    # x_ref  : (tm, tk)       bf16 (or mxu dtype)
    # w_ref  : (tk, 2*tn)     bf16 — columns [W_h tile | W_g tile]
    # b_ref  : (1, 2*tn)      f32
    # o_ref  : (tm, tn)       output dtype
    # acc_ref: (tm, 2*tn)     f32 scratch, carried across the K axis
    k = pl.program_id(2)

    @pl.when(k == 0)
    def _():
        acc_ref[...] = jnp.zeros_like(acc_ref)

    acc_ref[...] += jnp.dot(
        x_ref[...], w_ref[...], preferred_element_type=jnp.float32
    )

    @pl.when(k == pl.num_programs(2) - 1)
    def _():
        y = acc_ref[...] + b_ref[...]          # f32 (tm, 2*tn)
        h = y[:, :tn]
        g = y[:, tn:]
        # Exact erf GELU (matches torch.nn.functional.gelu default).
        gelu_g = 0.5 * g * (1.0 + jax.lax.erf(g * jnp.float32(_INV_SQRT2)))
        o_ref[...] = (h * gelu_g).astype(o_ref.dtype)


# --------------------------------------------------------------------------- #
# Tiling plan + one-time parameter packing
# --------------------------------------------------------------------------- #
class _Plan(NamedTuple):
    dim_in: int
    dim_out: int
    tn: int        # N tile (multiple of 128)
    tk: int        # K tile (multiple of 128 or == dim_in)
    k_pad: int     # padded contraction dim
    dout_pad: int  # padded output dim


def _round_up(x, m):
    return (x + m - 1) // m * m


def _choose_tn(dim_out, pref):
    """Largest multiple of 128, <= pref, dividing round_up(dim_out, 128)."""
    padded = _round_up(dim_out, 128)
    cand = min(pref, padded)
    cand -= cand % 128
    while cand >= 128:
        if padded % cand == 0:
            return cand
        cand -= 128
    return padded


def make_geglu_plan(dim_in, dim_out, *, tn=256, tk=512):
    tn_eff = _choose_tn(dim_out, tn)
    dout_pad = _round_up(dim_out, tn_eff)
    if dim_in <= tk:
        tk_eff, k_pad = dim_in, dim_in       # single K step, full-width block
    else:
        tk_eff = max(128, tk - tk % 128)
        k_pad = _round_up(dim_in, tk_eff)
    return _Plan(dim_in, dim_out, tn_eff, tk_eff, k_pad, dout_pad)


def pack_geglu_params(w, b, plan, *, mxu_dtype=jnp.bfloat16):
    """Pack PyTorch nn.Linear params once (call at parameter-load time).

    w: (2*dim_out, dim_in), b: (2*dim_out,)
    Returns:
      w_packed: (k_pad, 2*dout_pad)  mxu_dtype; per N-tile j the columns are
                [W_h tile j | W_g tile j].
      b_packed: (1, 2*dout_pad)      f32, same per-tile interleaving.
    """
    dim_in, dim_out, tn = plan.dim_in, plan.dim_out, plan.tn
    nj = plan.dout_pad // tn
    pad_k = plan.k_pad - dim_in
    pad_n = plan.dout_pad - dim_out

    w_h = jnp.pad(jnp.transpose(w[:dim_out, :]), ((0, pad_k), (0, pad_n)))
    w_g = jnp.pad(jnp.transpose(w[dim_out:, :]), ((0, pad_k), (0, pad_n)))
    w_packed = jnp.stack(
        [w_h.reshape(plan.k_pad, nj, tn), w_g.reshape(plan.k_pad, nj, tn)],
        axis=2,
    ).reshape(plan.k_pad, 2 * plan.dout_pad).astype(mxu_dtype)

    b_h = jnp.pad(b[:dim_out], (0, pad_n)).reshape(nj, tn)
    b_g = jnp.pad(b[dim_out:], (0, pad_n)).reshape(nj, tn)
    b_packed = jnp.stack([b_h, b_g], axis=1).reshape(1, 2 * plan.dout_pad)
    return w_packed, b_packed.astype(jnp.float32)


# --------------------------------------------------------------------------- #
# Forward
# --------------------------------------------------------------------------- #
def geglu(x, w_packed, b_packed, plan, *, tm=256, mxu_dtype=jnp.bfloat16,
          out_dtype=None):
    """x: (..., dim_in) -> (..., dim_out)."""
    *lead, dim_in = x.shape
    assert dim_in == plan.dim_in
    out_dtype = out_dtype or x.dtype

    M = math.prod(lead) if lead else 1
    x2 = x.reshape(M, dim_in)

    tm_eff = min(tm, _round_up(max(M, 1), 8))
    m_pad = _round_up(M, tm_eff)
    pad_m = m_pad - M
    pad_k = plan.k_pad - dim_in
    if pad_m or pad_k:
        x2 = jnp.pad(x2, ((0, pad_m), (0, pad_k)))
    x2 = x2.astype(mxu_dtype)

    tn, tk = plan.tn, plan.tk
    gm = m_pad // tm_eff
    gn = plan.dout_pad // tn
    gk = plan.k_pad // tk

    bytes_in = jnp.dtype(mxu_dtype).itemsize
    bytes_out = jnp.dtype(out_dtype).itemsize
    needed = (2 * tm_eff * tk * bytes_in        # x tile, double-buffered
              + 2 * tk * 2 * tn * bytes_in      # packed weight tile
              + 2 * 2 * tn * 4                  # bias tile
              + 2 * tm_eff * tn * bytes_out     # output tile
              + tm_eff * 2 * tn * 4)            # f32 accumulator scratch
    vmem_limit = int(min(max(2 * needed + (4 << 20), 16 << 20), 48 << 20))

    kernel = functools.partial(_geglu_kernel, tn=tn)

    out = pl.pallas_call(
        kernel,
        out_shape=jax.ShapeDtypeStruct((m_pad, plan.dout_pad), out_dtype),
        grid_spec=pltpu.PrefetchScalarGridSpec(
            num_scalar_prefetch=0,
            grid=(gm, gn, gk),
            in_specs=[
                pl.BlockSpec((tm_eff, tk), lambda i, j, k: (i, k)),
                pl.BlockSpec((tk, 2 * tn), lambda i, j, k: (k, j)),
                pl.BlockSpec((1, 2 * tn), lambda i, j, k: (0, j)),
            ],
            out_specs=pl.BlockSpec((tm_eff, tn), lambda i, j, k: (i, j)),
            scratch_shapes=[pltpu.VMEM((tm_eff, 2 * tn), jnp.float32)],
        ),
        compiler_params=pltpu.CompilerParams(
            dimension_semantics=("parallel", "parallel", "arbitrary"),
            vmem_limit_bytes=vmem_limit,
        ),
    )(x2, w_packed, b_packed)

    out = out[:M, :plan.dim_out]
    return out.reshape(*lead, plan.dim_out)


# --------------------------------------------------------------------------- #
# Reference (matches the MXU input dtype so the comparison is apples-to-apples)
# --------------------------------------------------------------------------- #
def _geglu_ref(x, w, b, mxu_dtype=jnp.bfloat16):
    xm = x.astype(mxu_dtype).astype(jnp.float32)
    wm = w.astype(mxu_dtype).astype(jnp.float32)
    y = jnp.einsum("...i,oi->...o", xm, wm,
                   preferred_element_type=jnp.float32) + b
    dim_out = w.shape[0] // 2
    h, g = y[..., :dim_out], y[..., dim_out:]
    return h * (0.5 * g * (1.0 + jax.lax.erf(g * jnp.float32(_INV_SQRT2))))


if __name__ == "__main__":
    key = jax.random.PRNGKey(0)
    kx, kw, kb, kx2 = jax.random.split(key, 4)

    # Small shapes consistent with the module: (batch, seq, dim_in).
    batch, seq, dim_in, dim_out = 2, 8, 32, 32
    bound = 1.0 / math.sqrt(dim_in)
    w = jax.random.uniform(kw, (2 * dim_out, dim_in), jnp.float32, -bound, bound)
    b = jax.random.uniform(kb, (2 * dim_out,), jnp.float32, -bound, bound)

    plan = make_geglu_plan(dim_in, dim_out)
    w_packed, b_packed = pack_geglu_params(w, b, plan)   # one-time packing

    # Case 1: basic shape.
    x = jax.random.normal(kx, (batch, seq, dim_in), dtype=jnp.float32)
    out = jax.block_until_ready(geglu(x, w_packed, b_packed, plan))
    ref = _geglu_ref(x, w, b)
    assert out.shape == (batch, seq, dim_out)
    assert jnp.allclose(out, ref, atol=1e-3, rtol=1e-3), "mismatch vs reference"

    # Case 2: ragged row count (exercises M padding in the wrapper).
    x2 = jax.random.normal(kx2, (batch, 7, dim_in), dtype=jnp.float32)
    out2 = jax.block_until_ready(geglu(x2, w_packed, b_packed, plan))
    ref2 = _geglu_ref(x2, w, b)
    assert out2.shape == (batch, 7, dim_out)
    assert jnp.allclose(out2, ref2, atol=1e-3, rtol=1e-3), "mismatch vs reference"

    print("KERNEL_OK")
</pallas_src>

<mosaic_0001>
module attributes {stable_mosaic.version = 11 : i64} {
  func.func @_geglu_kernel(%arg0: i32, %arg1: i32, %arg2: i32, %arg3: memref<16x32xbf16, #tpu.memory_space<vmem>>, %arg4: memref<32x256xbf16, #tpu.memory_space<vmem>>, %arg5: memref<1x256xf32, #tpu.memory_space<vmem>>, %arg6: memref<16x128xf32, #tpu.memory_space<vmem>>, %arg7: memref<16x256xf32, #tpu.memory_space<vmem>>) attributes {dimension_semantics = [#tpu.dimension_semantics<parallel>, #tpu.dimension_semantics<parallel>, #tpu.dimension_semantics<arbitrary>], iteration_bounds = array<i64: 1, 1, 1>, scalar_prefetch = 0 : i64, scratch_operands = 1 : i64, tpu.core_type = #tpu.core_type<tc>, window_params = [{transform_indices = @transform_0, window_bounds = array<i64: 16, 32>}, {transform_indices = @transform_1, window_bounds = array<i64: 32, 256>}, {transform_indices = @transform_2, window_bounds = array<i64: 1, 256>}, {transform_indices = @transform_3, window_bounds = array<i64: 16, 128>}]} {
    %c0_i32 = arith.constant 0 : i32
    %0 = arith.cmpi eq, %arg2, %c0_i32 : i32
    %1 = arith.extui %0 : i1 to i32
    %c0_i32_0 = arith.constant 0 : i32
    %2 = arith.cmpi ne, %1, %c0_i32_0 : i32
    scf.if %2 {
      %cst_10 = arith.constant 0.000000e+00 : f32
      %12 = vector.broadcast %cst_10 : f32 to vector<16x256xf32>
      %c0_11 = arith.constant 0 : index
      %c0_12 = arith.constant 0 : index
      %13 = vector.load %arg7[%c0_11, %c0_12] : memref<16x256xf32, #tpu.memory_space<vmem>>, vector<16x256xf32>
      tpu.vector_store %arg7[%c0_11, %c0_12], %12 {strides = array<i32>} : memref<16x256xf32, #tpu.memory_space<vmem>>, vector<16x256xf32>,
    } else {
    }
    %c0 = arith.constant 0 : index
    %c0_1 = arith.constant 0 : index
    %3 = vector.load %arg7[%c0, %c0_1] : memref<16x256xf32, #tpu.memory_space<vmem>>, vector<16x256xf32>
    %c0_2 = arith.constant 0 : index
    %c0_3 = arith.constant 0 : index
    %4 = vector.load %arg3[%c0_2, %c0_3] : memref<16x32xbf16, #tpu.memory_space<vmem>>, vector<16x32xbf16>
    %c0_4 = arith.constant 0 : index
    %c0_5 = arith.constant 0 : index
    %5 = vector.load %arg4[%c0_4, %c0_5] : memref<32x256xbf16, #tpu.memory_space<vmem>>, vector<32x256xbf16>
    %cst = arith.constant dense<0.000000e+00> : vector<16x256xf32>
    %6 = tpu.matmul %4, %5, %cst {dimension_numbers = #tpu.dot_dimension_numbers<[1], [0], [0], [1], [0, 0, 1, 1], [], []>} : vector<16x32xbf16>, vector<32x256xbf16>, vector<16x256xf32> -> vector<16x256xf32>
    %7 = arith.addf %3, %6 : vector<16x256xf32>
    %c0_6 = arith.constant 0 : index
    %c0_7 = arith.constant 0 : index
    %8 = vector.load %arg7[%c0_6, %c0_7] : memref<16x256xf32, #tpu.memory_space<vmem>>, vector<16x256xf32>
    tpu.vector_store %arg7[%c0_6, %c0_7], %7 {strides = array<i32>} : memref<16x256xf32, #tpu.memory_space<vmem>>, vector<16x256xf32>,
    %c0_i32_8 = arith.constant 0 : i32
    %9 = arith.cmpi eq, %arg2, %c0_i32_8 : i32
    %10 = arith.extui %9 : i1 to i32
    %c0_i32_9 = arith.constant 0 : i32
    %11 = arith.cmpi ne, %10, %c0_i32_9 : i32
    scf.if %11 {
      %c0_10 = arith.constant 0 : index
      %c0_11 = arith.constant 0 : index
      %12 = vector.load %arg7[%c0_10, %c0_11] : memref<16x256xf32, #tpu.memory_space<vmem>>, vector<16x256xf32>
      %c0_12 = arith.constant 0 : index
      %c0_13 = arith.constant 0 : index
      %13 = vector.load %arg5[%c0_12, %c0_13] : memref<1x256xf32, #tpu.memory_space<vmem>>, vector<1x256xf32>
      %14 = vector.broadcast %13 : vector<1x256xf32> to vector<16x256xf32>
      %15 = arith.addf %12, %14 : vector<16x256xf32>
      %16 = vector.extract_strided_slice %15 {offsets = [0, 0], sizes = [16, 128], strides = [1, 1]} : vector<16x256xf32> to vector<16x128xf32>
      %17 = vector.extract_strided_slice %15 {offsets = [0, 128], sizes = [16, 128], strides = [1, 1]} : vector<16x256xf32> to vector<16x128xf32>
      %cst_14 = arith.constant 5.000000e-01 : f32
      %18 = vector.broadcast %cst_14 : f32 to vector<16x128xf32>
      %19 = arith.mulf %18, %17 : vector<16x128xf32>
      %cst_15 = arith.constant 0.707106769 : f32
      %20 = vector.broadcast %cst_15 : f32 to vector<16x128xf32>
      %21 = arith.mulf %17, %20 : vector<16x128xf32>
      %22 = math.erf %21 : vector<16x128xf32>
      %cst_16 = arith.constant 1.000000e+00 : f32
      %23 = vector.broadcast %cst_16 : f32 to vector<16x128xf32>
      %24 = arith.addf %23, %22 : vector<16x128xf32>
      %25 = arith.mulf %19, %24 : vector<16x128xf32>
      %26 = arith.mulf %16, %25 : vector<16x128xf32>
      %c0_17 = arith.constant 0 : index
      %c0_18 = arith.constant 0 : index
      %27 = vector.load %arg6[%c0_17, %c0_18] : memref<16x128xf32, #tpu.memory_space<vmem>>, vector<16x128xf32>
      tpu.vector_store %arg6[%c0_17, %c0_18], %26 {strides = array<i32>} : memref<16x128xf32, #tpu.memory_space<vmem>>, vector<16x128xf32>,
    } else {
    }
    return
  }
  func.func @transform_0(%arg0: i32, %arg1: i32, %arg2: i32) -> (i32, i32) {
    %c0_i32 = arith.constant 0 : i32
    return %arg0, %arg2 : i32, i32
  }
  func.func @transform_1(%arg0: i32, %arg1: i32, %arg2: i32) -> (i32, i32) {
    %c0_i32 = arith.constant 0 : i32
    return %arg2, %arg1 : i32, i32
  }
  func.func @transform_2(%arg0: i32, %arg1: i32, %arg2: i32) -> (i32, i32) {
    %c0_i32 = arith.constant 0 : i32
    %c0_i32_0 = arith.constant 0 : i32
    return %c0_i32, %arg1 : i32, i32
  }
  func.func @transform_3(%arg0: i32, %arg1: i32, %arg2: i32) -> (i32, i32) {
    %c0_i32 = arith.constant 0 : i32
    return %arg0, %arg1 : i32, i32
  }
}

</mosaic_0001>

<llo_original>
// kernel: tpu_custom_call.1
$region0: #{tpu_custom_call.1}
  #allocation0 [shape = 'u32[]', space=smem, size = 0x4, offset = 0x4, fixed_abs, tag = 'smem constant byte address 0x4 - core index']
  #allocation1 [shape = 'u32[144,128]{1,0:T(1,128)}', space=vmem, size = 0x12000, scoped, tag = 'internal scratch']
  #allocation2 [shape = 'f32[16,256]{1,0:T(8,128)}', space=vmem, size = 0x4000, scoped, tag = 'scratch operand']
  %s0 = inlined_call_operand.hbm [shape: bf16[16,32], index: 0, kind: input, shape index: {}]
  %s1 = inlined_call_operand.hbm [shape: bf16[32,256], index: 1, kind: input, shape index: {}]
  %s2 = inlined_call_operand.vmem [shape: f32[1,256], index: 2, kind: input, shape index: {}]
  %s3 = inlined_call_operand.hbm [shape: f32[16,128], index: 3, kind: output, shape index: {}]
  %s4 = sld [smem:[#allocation0]]
  $region38: #{tpu_custom_call.1} parent=0
    _
  %s6 = ssub.s32 1, %s4
  %s7 = scalar_select 0, %s6, %s4
  $region1: #{tpu_custom_call.1} parent=0
    #allocation3 [shape = 'u8[4096]{0}', space=vmem, size = 0x1000, scoped, tag = 'input window, operand 0, single buffered']
    #allocation4 [shape = 's32[1]{0}', space=sflag, size = 0x4, scoped, tag = 'scoped memory for tpu_custom_call.1']
    #allocation5 [shape = 's32[1]{0}', space=sflag, size = 0x4, scoped, tag = 'scoped memory for tpu_custom_call.1']
    #allocation6 [shape = 'u8[16384]{0}', space=vmem, size = 0x4000, scoped, tag = 'input window, operand 1, single buffered']
    #allocation7 [shape = 's32[1]{0}', space=sflag, size = 0x4, scoped, tag = 'scoped memory for tpu_custom_call.1']
    #allocation8 [shape = 'u8[8192]{0}', space=vmem, size = 0x2000, scoped, tag = 'output window, operand 0, single buffered']
    %8 = vsyncpa [#allocation4], 0
    %9 = vsyncpa [#allocation7], 0
    %10 = vsyncpa [#allocation5], 0
    // Predicated region
    $region2: #{tpu_custom_call.1} parent=1 // pred_check
      _
    $region3: #{tpu_custom_call.1} parent=1 // pred_check_branch
      %12 = sbr.rel (0) target = $region5
    $region4: #{tpu_custom_call.1} parent=1 // pred_region
      %s14 = ssub.s32 128, 128
      %15 = vsyncadd [#allocation4], %s14
      %s16 = sshll.u32 [#allocation3], 4
      %s17 = int_to_ptr.vmem [resolvable:$true] %s16
      %22 = dma.hbm_to_vmem [thread:$0]  %s0, 128, %s17, [#allocation4], 64, 64, 4
    $region5: #{tpu_custom_call.1} parent=1 // pred_fallthru
      _
    // Predicated region
    $region6: #{tpu_custom_call.1} parent=1 // pred_check
      _
    $region7: #{tpu_custom_call.1} parent=1 // pred_check_branch
      %24 = sbr.rel (0) target = $region9
    $region8: #{tpu_custom_call.1} parent=1 // pred_region
      %s26 = ssub.s32 512, 512
      %27 = vsyncadd [#allocation7], %s26
      %s28 = sshll.u32 [#allocation6], 4
      %s29 = int_to_ptr.vmem [resolvable:$true] %s28
      %34 = dma.hbm_to_vmem [thread:$0]  %s1, 512, %s29, [#allocation7], 128, 128, 8
    $region9: #{tpu_custom_call.1} parent=1 // pred_fallthru
      _
    // Predicated region
    $region10: #{tpu_custom_call.1} parent=1 // pred_check
      _
    $region11: #{tpu_custom_call.1} parent=1 // pred_check_branch
      %36 = sbr.rel (0) target = $region13
    $region12: #{tpu_custom_call.1} parent=1 // pred_region
      _
    $region13: #{tpu_custom_call.1} parent=1 // pred_fallthru
      _
    // Predicated region
    $region14: #{tpu_custom_call.1} parent=1 // pred_check
      _
    $region15: #{tpu_custom_call.1} parent=1 // pred_check_branch
      %38 = sbr.rel (0) target = $region17
    $region16: #{tpu_custom_call.1} parent=1 // pred_region
      %39 = dma.done [#allocation4], 128
    $region17: #{tpu_custom_call.1} parent=1 // pred_fallthru
      _
    // Predicated region
    $region18: #{tpu_custom_call.1} parent=1 // pred_check
      _
    $region19: #{tpu_custom_call.1} parent=1 // pred_check_branch
      %41 = sbr.rel (0) target = $region21
    $region20: #{tpu_custom_call.1} parent=1 // pred_region
      %42 = dma.done [#allocation7], 512
    $region21: #{tpu_custom_call.1} parent=1 // pred_fallthru
      _
    %p44 = scmp.eq.s32.totalorder 0, 0
    // Predicated region
    $region22: #{tpu_custom_call.1} parent=1 // pred_check
      %p45 = pneg %p44
    $region23: #{tpu_custom_call.1} parent=1 // pred_check_branch
      %47 = sbr.rel (%p45) target = $region25
    $region24: #{tpu_custom_call.1} parent=1 // pred_region
      %48 = vst [vmem:[#allocation2] sm:$0xff] 0.0
      %49 = vst [vmem:[#allocation2 + $0x8] sm:$0xff] 0.0
      %50 = vst [vmem:[#allocation2 + $0x10] sm:$0xff] 0.0
      %51 = vst [vmem:[#allocation2 + $0x18] sm:$0xff] 0.0
    $region25: #{tpu_custom_call.1} parent=1 // pred_fallthru
      _
    %v52 = vld [vmem:[#allocation2] sm:$0xff]
    %v53 = vld [vmem:[#allocation2 + $0x8] sm:$0xff]
    %v54 = vld [vmem:[#allocation2 + $0x10] sm:$0xff]
    %v55 = vld [vmem:[#allocation2 + $0x18] sm:$0xff]
    %v56 = vld [vmem:[#allocation3] sm:$0xf]
    %v57 = vld [vmem:[#allocation3 + $0x4] sm:$0xf]
    %v58 = vld [vmem:[#allocation6] sm:$0xff]
    %v59 = vld [vmem:[#allocation6 + $0x8] sm:$0xff]
    %v60 = vld [vmem:[#allocation6 + $0x10] sm:$0xff]
    %v61 = vld [vmem:[#allocation6 + $0x18] sm:$0xff]
    %v64 = vunpack.c.l.b16 %v56
    %v65 = vunpack.c.l.b16 %v57
    %v66 = vpack.c.b16 %v65, %v64
    %v71 = vunpack.c.l.b16 %v58
    %v72 = vunpack.c.h.b16 %v58
    %v73 = vunpack.c.l.b16 %v59
    %v74 = vunpack.c.h.b16 %v59
    %v75 = vunpack.c.l.b16 %v60
    %v76 = vunpack.c.h.b16 %v60
    %v77 = vunpack.c.l.b16 %v61
    %v78 = vunpack.c.h.b16 %v61
    %v79 = vpack.c.b16 %v73, %v71
    %v80 = vpack.c.b16 %v74, %v72
    %v81 = vpack.c.b16 %v77, %v75
    %v82 = vpack.c.b16 %v78, %v76
    %vm87 = vcmask 261120
    %v89 = vsel %vm87, %v66, 0
    %91 = vmatprep.subr.bf16.mxu0 %v80
    %92 = vmatpush1.bf16.msra.mxu0 %v79
    %93 = vmatprep.subr.bf16.mxu0 %v82
    %94 = vmatpush1.bf16.msra.mxu0 %v81
    %95 = vmatprep.subr.bf16.mxu0 0
    %96 = vmatpush1.bf16.msra.mxu0 0
    %97 = vmatprep.subr.bf16.mxu0 0
    %98 = vmatpush1.bf16.msra.mxu0 0
    %99 = vmatprep.subr.bf16.mxu0 0
    %100 = vmatpush1.bf16.msra.mxu0 0
    %101 = vmatprep.subr.bf16.mxu0 0
    %102 = vmatpush1.bf16.msra.mxu0 0
    %103 = vmatprep.subr.bf16.mxu0 0
    %104 = vmatpush1.bf16.msra.mxu0 0
    %105 = vmatprep.subr.bf16.mxu0 0
    %106 = vmatpush1.bf16.msra.mxu0 0
    %107 = vmatprep.subr.bf16.mxu0 0
    %108 = vmatpush1.bf16.msra.mxu0 0
    %109 = vmatprep.subr.bf16.mxu0 0
    %110 = vmatpush1.bf16.msra.mxu0 0
    %111 = vmatprep.subr.bf16.mxu0 0
    %112 = vmatpush1.bf16.msra.mxu0 0
    %113 = vmatprep.subr.bf16.mxu0 0
    %114 = vmatpush1.bf16.msra.mxu0 0
    %115 = vmatprep.subr.bf16.mxu0 0
    %116 = vmatpush1.bf16.msra.mxu0 0
    %117 = vmatprep.subr.bf16.mxu0 0
    %118 = vmatpush1.bf16.msra.mxu0 0
    %119 = vmatprep.subr.bf16.mxu0 0
    %120 = vmatpush1.bf16.msra.mxu0 0
    %121 = vmatprep.subr.bf16.mxu0 0
    %122 = vmatpush1.bf16.msra.mxu0 0
    %123 = vmatprep.mubr.bf16.mxu0 0
    %124 = vmatmul.mubr.bf16.gmra.mrb[0].mxu0 %v89
    %v125 = vpop.f32.mrb[0].mxu0
    %v126 = vadd.f32 0.0, %v125
    %v127 = vpop.f32.mrb[0].mxu0
    %v128 = vadd.f32 0.0, %v127
    %v129 = vpop.f32.mrb[0].mxu0
    %v130 = vadd.f32 0.0, %v129
    %v131 = vpop.f32.mrb[0].mxu0
    %v132 = vadd.f32 0.0, %v131
    %133 = vdwg.mxu0
    %v134 = vadd.f32 %v52, %v126
    %v135 = vadd.f32 %v53, %v128
    %v136 = vadd.f32 %v54, %v130
    %v137 = vadd.f32 %v55, %v132
    %138 = vst [vmem:[#allocation2] sm:$0xff] %v134
    %139 = vst [vmem:[#allocation2 + $0x8] sm:$0xff] %v135
    %140 = vst [vmem:[#allocation2 + $0x10] sm:$0xff] %v136
    %141 = vst [vmem:[#allocation2 + $0x18] sm:$0xff] %v137
    // Predicated region
    $region26: #{tpu_custom_call.1} parent=1 // pred_check
      %p142 = pneg %p44
    $region27: #{tpu_custom_call.1} parent=1 // pred_check_branch
      %144 = sbr.rel (%p142) target = $region29
    $region28: #{tpu_custom_call.1} parent=1 // pred_region
      %v145 = vld [vmem:[#allocation2] sm:$0xff]
      %v146 = vld [vmem:[#allocation2 + $0x8] sm:$0xff]
      %v147 = vld [vmem:[#allocation2 + $0x10] sm:$0xff]
      %v148 = vld [vmem:[#allocation2 + $0x18] sm:$0xff]
      %v149 = vld [vmem:[%s2] sm:$0x3]
      %v151 = vlaneseq
      %v152 = vshrl.u32 %v151, 7
      %v153 = vsub.s32 0, %v152
      %v154 = vrot.slane %v149, %v153
      %v155 = vlaneseq
      %v156 = vshrl.u32 %v155, 7
      %v157 = vsub.s32 1, %v156
      %v158 = vrot.slane %v149, %v157
      %v161 = vadd.f32 %v145, %v154
      %v162 = vadd.f32 %v146, %v158
      %v163 = vadd.f32 %v147, %v154
      %v164 = vadd.f32 %v148, %v158
      %v165 = vmul.f32 %v162, 0.5
      %v166 = vmul.f32 %v164, 0.5
      %v167 = vmul.f32 %v162, 0.70710677
      %v168 = vmul.f32 %v164, 0.70710677
      %v169 = verf.f32.pop %v167
      %v170 = verf.f32.pop %v168
      %v171 = vadd.f32 %v169, 1.0
      %v172 = vadd.f32 %v170, 1.0
      %v173 = vmul.f32 %v165, %v171
      %v174 = vmul.f32 %v166, %v172
      %v175 = vmul.f32 %v161, %v173
      %v176 = vmul.f32 %v163, %v174
      %177 = vst [vmem:[#allocation8] sm:$0xff] %v175
      %178 = vst [vmem:[#allocation8 + $0x8] sm:$0xff] %v176
    $region29: #{tpu_custom_call.1} parent=1 // pred_fallthru
      _
    // Predicated region
    $region30: #{tpu_custom_call.1} parent=1 // pred_check
      _
    $region31: #{tpu_custom_call.1} parent=1 // pred_check_branch
      %180 = sbr.rel (0) target = $region33
    $region32: #{tpu_custom_call.1} parent=1 // pred_region
      %s182 = ssub.s32 256, 256
      %183 = vsyncadd [#allocation5], %s182
      %s184 = sshll.u32 [#allocation8], 4
      %s185 = int_to_ptr.vmem [resolvable:$true] %s184
      %190 = dma.vmem_to_hbm [thread:$0]  %s185, 256, %s3, [#allocation5], 128, 128, 8
    $region33: #{tpu_custom_call.1} parent=1 // pred_fallthru
      _
    // Predicated region
    $region34: #{tpu_custom_call.1} parent=1 // pred_check
      _
    $region35: #{tpu_custom_call.1} parent=1 // pred_check_branch
      %192 = sbr.rel (0) target = $region37
    $region36: #{tpu_custom_call.1} parent=1 // pred_region
      %193 = dma.done [#allocation5], 256
    $region37: #{tpu_custom_call.1} parent=1 // pred_fallthru
      _
    %194 = vsyncpa [#allocation4], 1
    %195 = vsyncpa [#allocation7], 1
    %196 = vsyncpa [#allocation5], 1

</llo_original>
